<compile_context>
chip_gen: v6e
topology: v6e:2x2x1
jax: 0.10.0
libtpu: 0.0.40
codegen_flags: <defaults>
</compile_context>

<pallas_src>
import functools

import jax
import jax.numpy as jnp
from jax.experimental import pallas as pl
from jax.experimental.pallas import tpu as pltpu


def _eca_kernel(w_ref, b_ref, x_ref, o_ref, *, ks):
    # w_ref: (1, ks) f32 in SMEM, b_ref: (1, 1) f32 in SMEM
    # x_ref / o_ref: (1, C, HW) VMEM tile for the current batch element
    #   (channels on sublanes, spatial positions on lanes -> lane-dense I/O)
    x = x_ref[0]                                    # (C, HW), input dtype
    c = x.shape[0]
    hw = x.shape[1]
    pad = (ks - 1) // 2

    # Arithmetic in f32 (safe for bf16 inputs too; accumulation stays f32).
    xf = x.astype(jnp.float32)

    # adaptive_avg_pool2d(x, 1): mean over spatial positions (lane reduction).
    pooled = jnp.sum(xf, axis=1, keepdims=True) * (1.0 / hw)  # (C, 1) f32

    # Conv1d(1, 1, ks, padding=pad) along the channel (sublane) axis.  The
    # pooled vector is only C values, so the shifted-slice work here is
    # negligible and completely off the HBM-bandwidth critical path.
    padded = jnp.pad(pooled, ((pad, pad), (0, 0)))            # (C + 2*pad, 1)
    conv = jnp.zeros((c, 1), dtype=jnp.float32) + b_ref[0, 0]
    for k in range(ks):                                       # ks is tiny & static
        conv = conv + w_ref[0, k] * padded[k:k + c, :]

    attn = jax.nn.sigmoid(conv)                               # (C, 1) f32

    # x * o.expand_as(x): broadcast the per-channel gate over all lanes.
    o_ref[0] = (xf * attn).astype(o_ref.dtype)


@functools.partial(jax.jit, static_argnames=("ks",))
def eca_attention(x, w, b, ks=3):
    """x: (B, C, H, W) (NCHW like PyTorch), w: (1, ks) f32, b: (1, 1) f32."""
    B, C, H, W = x.shape
    HW = H * W
    itemsize = jnp.dtype(x.dtype).itemsize

    # Free reshape of the NCHW buffer -- no transpose, no extra HBM traffic.
    xr = x.reshape(B, C, HW)

    # Explicit VMEM budget: double-buffered input + output slabs, with headroom.
    block_bytes = C * HW * itemsize
    vmem_limit = int(min(64 * 1024 * 1024, max(16 * 1024 * 1024, 6 * block_bytes)))

    cost = pl.CostEstimate(
        flops=2 * B * C * HW + B * C * (2 * ks + 1),
        transcendentals=B * C,                         # sigmoid
        bytes_accessed=2 * B * C * HW * itemsize + (ks + 1) * 4,
    )

    # TODO(synk): for very large per-batch slabs (C*HW*itemsize >~ 12 MiB, e.g.
    # big v7x feature maps) split into a pooled/conv/sigmoid pass plus an
    # HW-tiled gating pass so tiles stay inside VMEM and both TensorCores get
    # work even for B == 1; at these module-typical sizes the fused single-pass
    # kernel (2 HBM passes, the minimum) is strictly better.
    out = pl.pallas_call(
        functools.partial(_eca_kernel, ks=ks),
        out_shape=jax.ShapeDtypeStruct((B, C, HW), x.dtype),
        grid=(B,),
        in_specs=[
            pl.BlockSpec(memory_space=pltpu.MemorySpace.SMEM),   # conv weight
            pl.BlockSpec(memory_space=pltpu.MemorySpace.SMEM),   # conv bias
            pl.BlockSpec((1, C, HW), lambda i: (i, 0, 0)),       # x tile
        ],
        out_specs=pl.BlockSpec((1, C, HW), lambda i: (i, 0, 0)),
        input_output_aliases={2: 0},                             # reuse x's buffer
        cost_estimate=cost,
        compiler_params=pltpu.CompilerParams(
            dimension_semantics=("parallel",),
            vmem_limit_bytes=vmem_limit),
    )(w, b, xr)

    return out.reshape(B, C, H, W)


def eca_reference(x, w, b, ks=3):
    """Pure-JAX reference mirroring the PyTorch forward."""
    B, C, H, W = x.shape
    pad = (ks - 1) // 2
    pooled = jnp.mean(x, axis=(2, 3))                          # (B, C)
    padded = jnp.pad(pooled, ((0, 0), (pad, pad)))             # (B, C + 2*pad)
    conv = jnp.full((B, C), b[0, 0], dtype=jnp.float32)
    for k in range(ks):
        conv = conv + w[0, k] * padded[:, k:k + C]
    attn = jax.nn.sigmoid(conv)                                # (B, C)
    return x * attn[:, :, None, None]


if __name__ == "__main__":
    ks = 3
    B, C, H, W = 2, 4, 16, 16

    key = jax.random.PRNGKey(0)
    kx, kw, kb = jax.random.split(key, 3)

    x = jax.random.normal(kx, (B, C, H, W), dtype=jnp.float32)

    # Deterministic Conv1d(1, 1, ks) parameter init (uniform +/- 1/sqrt(ks),
    # matching the shapes/ranges of PyTorch's default init).
    bound = 1.0 / (ks ** 0.5)
    w = jax.random.uniform(kw, (1, ks), minval=-bound, maxval=bound,
                           dtype=jnp.float32)
    b = jax.random.uniform(kb, (1, 1), minval=-bound, maxval=bound,
                           dtype=jnp.float32)

    out = eca_attention(x, w, b, ks=ks)
    out = jax.block_until_ready(out)

    ref = eca_reference(x, w, b, ks=ks)
    assert out.shape == x.shape
    assert jnp.allclose(out, ref, atol=1e-5, rtol=1e-5), "mismatch vs reference"

    print("KERNEL_OK")
</pallas_src>

<mosaic_0001>
module attributes {stable_mosaic.version = 11 : i64} {
  func.func @_eca_kernel(%arg0: i32, %arg1: memref<1x3xf32, #tpu.memory_space<smem>>, %arg2: memref<1x1xf32, #tpu.memory_space<smem>>, %arg3: memref<1x4x256xf32, #tpu.memory_space<vmem>>, %arg4: memref<1x4x256xf32, #tpu.memory_space<vmem>>) attributes {dimension_semantics = [#tpu.dimension_semantics<parallel>], iteration_bounds = array<i64: 2>, scalar_prefetch = 0 : i64, scratch_operands = 0 : i64, tpu.core_type = #tpu.core_type<tc>, window_params = [{transform_indices = @transform_0, window_bounds = array<i64: 1, 3>}, {transform_indices = @transform_1, window_bounds = array<i64: 1, 1>}, {transform_indices = @transform_2, window_bounds = array<i64: 1, 4, 256>}, {transform_indices = @transform_3, window_bounds = array<i64: 1, 4, 256>}]} {
    %c0 = arith.constant 0 : index
    %c0_0 = arith.constant 0 : index
    %c0_1 = arith.constant 0 : index
    %0 = vector.load %arg3[%c0, %c0_0, %c0_1] : memref<1x4x256xf32, #tpu.memory_space<vmem>>, vector<1x4x256xf32>
    %1 = vector.shape_cast %0 : vector<1x4x256xf32> to vector<4x256xf32>
    %cst = arith.constant dense<0.000000e+00> : vector<4xf32>
    %2 = vector.multi_reduction <add>, %1, %cst [1] : vector<4x256xf32> to vector<4xf32>
    %3 = vector.shape_cast %2 : vector<4xf32> to vector<4x1xf32>
    %cst_2 = arith.constant 3.906250e-03 : f32
    %4 = vector.broadcast %cst_2 : f32 to vector<4x1xf32>
    %5 = arith.mulf %3, %4 : vector<4x1xf32>
    %c0_i32 = arith.constant 0 : i32
    %6 = arith.sitofp %c0_i32 : i32 to f32
    %7 = vector.broadcast %6 : f32 to vector<1x1xf32>
    %8 = tpu.concatenate %7, %5 in 0 : vector<1x1xf32>, vector<4x1xf32> -> vector<5x1xf32>
    %9 = vector.broadcast %6 : f32 to vector<1x1xf32>
    %10 = tpu.concatenate %8, %9 in 0 : vector<5x1xf32>, vector<1x1xf32> -> vector<6x1xf32>
    %cst_3 = arith.constant 0.000000e+00 : f32
    %11 = vector.broadcast %cst_3 : f32 to vector<4x1xf32>
    %c0_4 = arith.constant 0 : index
    %c0_5 = arith.constant 0 : index
    %12 = memref.load %arg2[%c0_4, %c0_5] : memref<1x1xf32, #tpu.memory_space<smem>>
    %13 = vector.broadcast %12 : f32 to vector<4x1xf32>
    %14 = arith.addf %11, %13 : vector<4x1xf32>
    %c0_6 = arith.constant 0 : index
    %c0_7 = arith.constant 0 : index
    %15 = memref.load %arg1[%c0_6, %c0_7] : memref<1x3xf32, #tpu.memory_space<smem>>
    %16 = vector.extract_strided_slice %10 {offsets = [0, 0], sizes = [4, 1], strides = [1, 1]} : vector<6x1xf32> to vector<4x1xf32>
    %17 = vector.broadcast %15 : f32 to vector<4x1xf32>
    %18 = arith.mulf %17, %16 : vector<4x1xf32>
    %19 = arith.addf %14, %18 : vector<4x1xf32>
    %c0_8 = arith.constant 0 : index
    %c1 = arith.constant 1 : index
    %20 = memref.load %arg1[%c0_8, %c1] : memref<1x3xf32, #tpu.memory_space<smem>>
    %21 = vector.extract_strided_slice %10 {offsets = [1, 0], sizes = [4, 1], strides = [1, 1]} : vector<6x1xf32> to vector<4x1xf32>
    %22 = vector.broadcast %20 : f32 to vector<4x1xf32>
    %23 = arith.mulf %22, %21 : vector<4x1xf32>
    %24 = arith.addf %19, %23 : vector<4x1xf32>
    %c0_9 = arith.constant 0 : index
    %c2 = arith.constant 2 : index
    %25 = memref.load %arg1[%c0_9, %c2] : memref<1x3xf32, #tpu.memory_space<smem>>
    %26 = vector.extract_strided_slice %10 {offsets = [2, 0], sizes = [4, 1], strides = [1, 1]} : vector<6x1xf32> to vector<4x1xf32>
    %27 = vector.broadcast %25 : f32 to vector<4x1xf32>
    %28 = arith.mulf %27, %26 : vector<4x1xf32>
    %29 = arith.addf %24, %28 : vector<4x1xf32>
    %30 = arith.negf %29 : vector<4x1xf32>
    %31 = math.exp %30 : vector<4x1xf32>
    %cst_10 = arith.constant 1.000000e+00 : f32
    %32 = vector.broadcast %cst_10 : f32 to vector<4x1xf32>
    %33 = arith.addf %32, %31 : vector<4x1xf32>
    %34 = arith.divf %32, %33 : vector<4x1xf32>
    %35 = vector.broadcast %34 : vector<4x1xf32> to vector<4x256xf32>
    %36 = arith.mulf %1, %35 : vector<4x256xf32>
    %c0_11 = arith.constant 0 : index
    %c0_12 = arith.constant 0 : index
    %c0_13 = arith.constant 0 : index
    %37 = vector.load %arg4[%c0_11, %c0_12, %c0_13] : memref<1x4x256xf32, #tpu.memory_space<vmem>>, vector<1x4x256xf32>
    %38 = vector.shape_cast %37 : vector<1x4x256xf32> to vector<4x256xf32>
    %39 = vector.shape_cast %36 : vector<4x256xf32> to vector<1x4x256xf32>
    tpu.vector_store %arg4[%c0_11, %c0_12, %c0_13], %39 {strides = array<i32>} : memref<1x4x256xf32, #tpu.memory_space<vmem>>, vector<1x4x256xf32>,
    return
  }
  func.func @transform_0(%arg0: i32) -> (i32, i32) {
    %c0_i32 = arith.constant 0 : i32
    %c0_i32_0 = arith.constant 0 : i32
    %c0_i32_1 = arith.constant 0 : i32
    return %c0_i32, %c0_i32_0 : i32, i32
  }
  func.func @transform_1(%arg0: i32) -> (i32, i32) {
    %c0_i32 = arith.constant 0 : i32
    %c0_i32_0 = arith.constant 0 : i32
    %c0_i32_1 = arith.constant 0 : i32
    return %c0_i32, %c0_i32_0 : i32, i32
  }
  func.func @transform_2(%arg0: i32) -> (i32, i32, i32) {
    %c0_i32 = arith.constant 0 : i32
    %c0_i32_0 = arith.constant 0 : i32
    %c0_i32_1 = arith.constant 0 : i32
    return %arg0, %c0_i32, %c0_i32_0 : i32, i32, i32
  }
  func.func @transform_3(%arg0: i32) -> (i32, i32, i32) {
    %c0_i32 = arith.constant 0 : i32
    %c0_i32_0 = arith.constant 0 : i32
    %c0_i32_1 = arith.constant 0 : i32
    return %arg0, %c0_i32, %c0_i32_0 : i32, i32, i32
  }
}

</mosaic_0001>

<llo_original>
// kernel: eca_attention.1
$region0: #{eca_attention.1}
  #allocation0 [shape = 'u32[]', space=smem, size = 0x4, offset = 0x4, fixed_abs, tag = 'smem constant byte address 0x4 - core index']
  #allocation1 [shape = 'u32[144,128]{1,0:T(1,128)}', space=vmem, size = 0x12000, scoped, tag = 'internal scratch']
  #allocation2 [shape = 'f32[1,1]{1,0:T(1,128)S(6)}', space=smem, size = 0x200, scoped, tag = 'scoped memory for eca_attention.1']
  %s0 = inlined_call_operand.vmem [shape: f32[1,3], index: 0, kind: input, shape index: {}]
  %s1 = inlined_call_operand.<no memory space> [shape: f32[1,1], index: 1, kind: input, shape index: {}]
  %s2 = inlined_call_operand.vmem [shape: f32[2,4,256], index: 2, kind: input, shape index: {}, may-alias: {2,3}]
  %s3 = inlined_call_operand.vmem [shape: f32[2,4,256], index: 3, kind: output, shape index: {}, may-alias: {2,3}]
  %s4 = sld [smem:[#allocation0]]
  $region49: #{eca_attention.1} parent=0
    _
  %s6 = ssub.s32 1, %s4
  %s7 = scalar_select 0, %s6, %s4
  %8 = sst [smem:[#allocation2]] %s1
  $region1: #{eca_attention.1} parent=0
    #allocation3 [shape = 'u8[512]{0}', space=smem, size = 0x200, scoped, tag = 'input window, operand 0, single buffered']
    #allocation4 [shape = 's32[2]{0}', space=sflag, size = 0x8, scoped, tag = 'scoped memory for eca_attention.1']
    %9 = vsyncpa [#allocation4], 0
    loop: start=0, step=1, limit=4
    $region2: #{eca_attention.1} parent=1 // loop_pre_header
      _
    $region3: #{eca_attention.1} parent=1 // loop_header
      %s11 = sphi 0, %s15
      %p12 = scmp.ge.s32.totalorder %s11, 4
      %s19 = sphi 0, %s19
      %s21 = sphi 0, %s19
      %s22 = sphi 0, %s21
      %s36 = sphi 0, %s22
      %s40 = sphi 0, %s40
      %s42 = sphi 0, %s40
      %s43 = sphi 0, %s42
      %s57 = sphi 0, %s43
      %s63 = sphi 0, %s65
      %s66 = sphi 0, %s63
      %s67 = sphi 0, %s66
      %s83 = sphi 0, %s67
      %s89 = sphi 0, %s91
      %s92 = sphi 0, %s89
      %s93 = sphi 0, %s92
      %s109 = sphi 0, %s93
    $region4: #{eca_attention.1} parent=1 // loop_header_branch
      %14 = sbr.rel (%p12) target = $region8
    $region5: #{eca_attention.1} parent=1 // loop_body
      %s16 = ssub.s32 %s11, 1
      %s17 = ssub.s32 %s11, 2
      %s18 = sadd.s32 %s11, 1
      %s20 = sadd.s32 %s19, 1
      %p23 = scmp.eq.s32.totalorder %s11, 1
      %p24 = scmp.ne.s32.totalorder %s19, %s21
      %p25 = scmp.eq.s32.totalorder %s11, 0
      %p26 = por %p24, %p25
      %p27 = scmp.ne.s32.totalorder %s19, %s21
      %p28 = scmp.eq.s32.totalorder %s16, 1
      %p29 = por %p27, %p28
      %p30 = scmp.ne.s32.totalorder %s21, %s22
      %p31 = scmp.eq.s32.totalorder %s16, 0
      %p32 = por %p30, %p31
      %p33 = scmp.ne.s32.totalorder %s21, %s22
      %p34 = scmp.eq.s32.totalorder %s17, 1
      %p35 = por %p33, %p34
      %p37 = scmp.ne.s32.totalorder %s22, %s36
      %p38 = scmp.eq.s32.totalorder %s17, 0
      %p39 = por %p37, %p38
      %s41 = sadd.s32 %s40, 1
      %p44 = scmp.eq.s32.totalorder %s11, 1
      %p45 = scmp.ne.s32.totalorder %s40, %s42
      %p46 = scmp.eq.s32.totalorder %s11, 0
      %p47 = por %p45, %p46
      %p48 = scmp.ne.s32.totalorder %s40, %s42
      %p49 = scmp.eq.s32.totalorder %s16, 1
      %p50 = por %p48, %p49
      %p51 = scmp.ne.s32.totalorder %s42, %s43
      %p52 = scmp.eq.s32.totalorder %s16, 0
      %p53 = por %p51, %p52
      %p54 = scmp.ne.s32.totalorder %s42, %s43
      %p55 = scmp.eq.s32.totalorder %s17, 1
      %p56 = por %p54, %p55
      %p58 = scmp.ne.s32.totalorder %s43, %s57
      %p59 = scmp.eq.s32.totalorder %s17, 0
      %p60 = por %p58, %p59
      %s61 = ssub.s32 %s11, %s18
      %p62 = scmp.eq.s32.totalorder %s61, 0
      %s64 = sadd.s32 %s63, 1
      %s65 = scalar_select %p62, %s63, %s64
      %p68 = pneg %p62
      %p69 = scmp.eq.s32.totalorder %s11, 1
      %p70 = por %p68, %p69
      %p71 = scmp.ne.s32.totalorder %s63, %s66
      %p72 = scmp.eq.s32.totalorder %s11, 0
      %p73 = por %p71, %p72
      %p74 = scmp.ne.s32.totalorder %s63, %s66
      %p75 = scmp.eq.s32.totalorder %s16, 1
      %p76 = por %p74, %p75
      %p77 = scmp.ne.s32.totalorder %s66, %s67
      %p78 = scmp.eq.s32.totalorder %s16, 0
      %p79 = por %p77, %p78
      %p80 = scmp.ne.s32.totalorder %s66, %s67
      %p81 = scmp.eq.s32.totalorder %s17, 1
      %p82 = por %p80, %p81
      %p84 = scmp.ne.s32.totalorder %s67, %s83
      %p85 = scmp.eq.s32.totalorder %s17, 0
      %p86 = por %p84, %p85
      %s87 = ssub.s32 %s11, %s18
      %p88 = scmp.eq.s32.totalorder %s87, 0
      %s90 = sadd.s32 %s89, 1
      %s91 = scalar_select %p88, %s89, %s90
      %p94 = pneg %p88
      %p95 = scmp.eq.s32.totalorder %s11, 1
      %p96 = por %p94, %p95
      %p97 = scmp.ne.s32.totalorder %s89, %s92
      %p98 = scmp.eq.s32.totalorder %s11, 0
      %p99 = por %p97, %p98
      %p100 = scmp.ne.s32.totalorder %s89, %s92
      %p101 = scmp.eq.s32.totalorder %s16, 1
      %p102 = por %p100, %p101
      %p103 = scmp.ne.s32.totalorder %s92, %s93
      %p104 = scmp.eq.s32.totalorder %s16, 0
      %p105 = por %p103, %p104
      %p106 = scmp.ne.s32.totalorder %s92, %s93
      %p107 = scmp.eq.s32.totalorder %s17, 1
      %p108 = por %p106, %p107
      %p110 = scmp.ne.s32.totalorder %s93, %s109
      %p111 = scmp.eq.s32.totalorder %s17, 0
      %p112 = por %p110, %p111
      %p113 = scmp.le.s32.totalorder 1, %s11
      %p114 = scmp.lt.s32.totalorder %s11, 3
      %p115 = pnand %p113, %p114
      %p116 = pneg %p115
      // Predicated region
      $region9: #{eca_attention.1} parent=5 // pred_check
        _
      $region10: #{eca_attention.1} parent=5 // pred_check_branch
        %118 = sbr.rel (%p115) target = $region12
      $region11: #{eca_attention.1} parent=5 // pred_region
        %s119 = ssub.s32 %s11, 1
        // Predicated region
        $region13: #{eca_attention.1} parent=11 // pred_check
          %p120 = pneg %p32
        $region14: #{eca_attention.1} parent=11 // pred_check_branch
          %122 = sbr.rel (%p120) target = $region16
        $region15: #{eca_attention.1} parent=11 // pred_region
          %s124 = ssub.s32 16, 16
          %125 = vsyncadd [#allocation4], %s124
          %s127 = sshll.u32 %s0, 4
          %s128 = int_to_ptr.vmem [resolvable:$true] %s127
          %130 = dma.vmem_to_smem %s128, 16, [#allocation3], [#allocation4]
        $region16: #{eca_attention.1} parent=11 // pred_fallthru
          _
        // Predicated region
        $region17: #{eca_attention.1} parent=11 // pred_check
          %p131 = pneg %p53
        $region18: #{eca_attention.1} parent=11 // pred_check_branch
          %133 = sbr.rel (%p131) target = $region20
        $region19: #{eca_attention.1} parent=11 // pred_region
          _
        $region20: #{eca_attention.1} parent=11 // pred_fallthru
          _
      $region12: #{eca_attention.1} parent=5 // pred_fallthru
        _
      %p134 = scmp.lt.s32.totalorder %s11, 2
      // Predicated region
      $region21: #{eca_attention.1} parent=5 // pred_check
        %p135 = pneg %p134
      $region22: #{eca_attention.1} parent=5 // pred_check_branch
        %137 = sbr.rel (%p135) target = $region24
      $region23: #{eca_attention.1} parent=5 // pred_region
        // Predicated region
        $region25: #{eca_attention.1} parent=23 // pred_check
          %p138 = pneg %p73
        $region26: #{eca_attention.1} parent=23 // pred_check_branch
          %140 = sbr.rel (%p138) target = $region28
        $region27: #{eca_attention.1} parent=23 // pred_region
          %p141 = scmp.lt.s32.totalorder %s11, 1
          %s142 = scalar_select %p141, %s11, 1
          %s143 = smul.addr %s142, 2
          %s144 = smul.addr %s143, 4
          %s145 = scalar_lea.vmem %s2, %s144
        $region28: #{eca_attention.1} parent=23 // pred_fallthru
          _
      $region24: #{eca_attention.1} parent=5 // pred_fallthru
        _
      %p146 = scmp.le.s32.totalorder 1, %s11
      %p147 = scmp.lt.s32.totalorder %s11, 3
      %p148 = pnand %p146, %p147
      %p149 = pneg %p148
      // Predicated region
      $region29: #{eca_attention.1} parent=5 // pred_check
        _
      $region30: #{eca_attention.1} parent=5 // pred_check_branch
        %151 = sbr.rel (%p148) target = $region32
      $region31: #{eca_attention.1} parent=5 // pred_region
        %s152 = ssub.s32 %s11, 1
        // Predicated region
        $region33: #{eca_attention.1} parent=31 // pred_check
          %p153 = pneg %p32
        $region34: #{eca_attention.1} parent=31 // pred_check_branch
          %155 = sbr.rel (%p153) target = $region36
        $region35: #{eca_attention.1} parent=31 // pred_region
          %156 = dma.done [#allocation4], 16
        $region36: #{eca_attention.1} parent=31 // pred_fallthru
          _
        %157 = sfence
        %p158 = pneg %p32
        %p159 = pneg %p29
        %p160 = pneg %p53
        %p161 = pneg %p50
        %p162 = scmp.lt.s32.totalorder %s16, 1
        %s163 = scalar_select %p162, %s16, 1
        %s164 = smul.addr %s163, 2
        %s165 = smul.addr %s164, 4
        %s166 = scalar_lea.vmem %s2, %s165
        %p167 = pneg %p79
        %p168 = pneg %p76
        %p169 = pneg %p105
        %p170 = pneg %p102
        %p171 = scmp.lt.s32.totalorder %s16, 1
        %s172 = scalar_select %p171, %s16, 1
        %s173 = smul.addr %s172, 2
        %s174 = smul.addr %s173, 4
        %s175 = scalar_lea.vmem %s3, %s174
        %p176 = scmp.lt.s32.totalorder %s16, 1
        %s177 = scalar_select %p176, %s16, 1
        %s178 = smul.addr %s177, 2
        %s179 = smul.addr %s178, 4
        %s180 = scalar_lea.vmem %s2, %s179
        %p181 = scmp.lt.s32.totalorder %s16, 1
        %s182 = scalar_select %p181, %s16, 1
        %s183 = smul.addr %s182, 2
        %s184 = smul.addr %s183, 4
        %s185 = scalar_lea.vmem %s3, %s184
        %v186 = vld [vmem:[%s180] sm:$0xff]
        %v188 = vcombine.high %v186, %v186
        %vm190 = vcmask 1043456
        %v191 = vsel %vm190, %v186, 0.0
        %v192 = vsel %vm190, %v188, 0.0
        %v193 = vadd.f32 %v191, %v192
        %194 = vadd.xlane.f32.xlu0 %v193
        %v195 = vpop.xlane.xlu0 %194
        %v196 = vmul.f32 %v195, 0.00390625
        %v198 = vrot.slane %v196, 7
        %vm200 = vcmask 1040384
        %v201 = vsel %vm200, 0.0, %v198
        %vm202 = vcmask 1044480
        %v203 = vsel %vm202, %v201, 0.0
        %s204 = sld [smem:[#allocation2]]
        %v205 = vstv %s204
        %v206 = vadd.f32 %v205, 0.0
        %s207 = sld [smem:[#allocation3]]
        %v208 = vstv %s207
        %v209 = vmul.f32 %v208, %v203
        %v210 = vadd.f32 %v206, %v209
        %s211 = sld [smem:[#allocation3 + $0x1]]
        %v212 = vstv %s211
        %v213 = vmul.f32 %v212, %v203
        %v215 = vrot.slane %v213, 1
        %v217 = vadd.f32 %v210, %v215
        %s218 = sld [smem:[#allocation3 + $0x2]]
        %v219 = vstv %s218
        %v220 = vmul.f32 %v219, %v203
        %v222 = vrot.slane %v220, 2
        %v224 = vadd.f32 %v217, %v222
        %v225 = vxor.u32 %v224, 2147483648
        %v226 = vmul.f32 %v225, 1.442695
        %v227 = vpow.pop %v226
        %v228 = vadd.f32 %v227, 1.0
        %v229 = vrcp.pop %v228
        %v230 = vmul.f32 1.0, %v229
        %232 = vset.pattern.permute.xlu0 0
        %233 = vperm.xlu0 %232, %v230
        %v234 = vpop.permute.xlu0 %233
        %v236 = vunpack.c.l.s4 839922192
        %v237 = vunpack.c.0.s8 %v236
        %v238 = vlaneseq
        %v239 = vshrl.u32 %v238, 7
        %v240 = vsub.s32 %v237, %v239
        %v241 = vrot.slane %v234, %v240
        %v243 = vmul.f32 %v186, %v241
        %244 = vst [vmem:[%s185] sm:$0xff] %v243
        %p245 = scmp.lt.s32.totalorder %s16, 1
        %s246 = scalar_select %p245, %s16, 1
        %s247 = smul.addr %s246, 2
        %s248 = smul.addr %s247, 4
        %s249 = scalar_lea.vmem %s3, %s248
        // Predicated region
        $region37: #{eca_attention.1} parent=31 // pred_check
          %p250 = pneg %p102
        $region38: #{eca_attention.1} parent=31 // pred_check_branch
          %252 = sbr.rel (%p250) target = $region40
        $region39: #{eca_attention.1} parent=31 // pred_region
          _
        $region40: #{eca_attention.1} parent=31 // pred_fallthru
          _
      $region32: #{eca_attention.1} parent=5 // pred_fallthru
        _
      %p253 = scmp.le.s32.totalorder 2, %s11
      // Predicated region
      $region41: #{eca_attention.1} parent=5 // pred_check
        %p254 = pneg %p253
      $region42: #{eca_attention.1} parent=5 // pred_check_branch
        %256 = sbr.rel (%p254) target = $region44
      $region43: #{eca_attention.1} parent=5 // pred_region
        %s257 = ssub.s32 %s11, 2
        // Predicated region
        $region45: #{eca_attention.1} parent=43 // pred_check
          %p258 = pneg %p108
        $region46: #{eca_attention.1} parent=43 // pred_check_branch
          %260 = sbr.rel (%p258) target = $region48
        $region47: #{eca_attention.1} parent=43 // pred_region
          %p261 = scmp.lt.s32.totalorder %s17, 1
          %s262 = scalar_select %p261, %s17, 1
          %s263 = smul.addr %s262, 2
          %s264 = smul.addr %s263, 4
          %s265 = scalar_lea.vmem %s3, %s264
        $region48: #{eca_attention.1} parent=43 // pred_fallthru
          _
      $region44: #{eca_attention.1} parent=5 // pred_fallthru
        _
    $region6: #{eca_attention.1} parent=1 // loop_footer
      %s15 = sadd.s32 1, %s11
    $region7: #{eca_attention.1} parent=1 // loop_footer_branch
      %10 = sbr.rel target = $region3
    $region8: #{eca_attention.1} parent=1 // loop_exit
      _
    %266 = vsyncpa [#allocation4], 1
    %s267 = scalar_lea.sflag [#allocation4], 1
    %268 = vsyncpa %s267, 1

</llo_original>
